<compile_context>
chip_gen: v7x
topology: tpu7x:2x2x1
jax: 0.10.0
libtpu: 0.0.40
codegen_flags: <defaults>
</compile_context>

<pallas_src>
import functools

import jax
import jax.numpy as jnp
from jax.experimental import pallas as pl
from jax.experimental.pallas import tpu as pltpu

_LANES = 128
_MAX_BLOCK_ROWS = 4096   # 4096 x 128 x 4B = 2 MiB per f32 input block
_MAX_PARTITIONS = 2      # v7x has 2 TensorCores; harmless on v5e/v6e


def _smooth_huber_kernel(x_ref, y_ref, o_ref, *, beta, delta, rows_valid,
                         block_rows, acc_rows, steps_per_part, need_mask):
    p = pl.program_id(0)   # partition (parallel axis, sharded across TCs)
    j = pl.program_id(1)   # row-block step within the partition (reduction)

    @pl.when(j == 0)
    def _():
        o_ref[...] = jnp.zeros_like(o_ref)

    # Load in native dtype, cast to f32 in-register.
    x = x_ref[...].astype(jnp.float32)
    y = y_ref[...].astype(jnp.float32)
    d = x - y
    ad = jnp.abs(d)
    # Elementwise Huber (delta=1.0 matches torch.nn.HuberLoss default).
    huber = jnp.where(ad < delta, 0.5 * d * d, delta * (ad - 0.5 * delta))
    contrib = huber + beta * ad

    if need_mask:
        # Mask garbage rows of a ragged last block and any clamped duplicate
        # block of the second partition. Lane padding is zero-valued and
        # contributes 0, so a row-level mask is sufficient.
        b = p * steps_per_part + j                      # logical block index
        row = jax.lax.broadcasted_iota(jnp.int32, contrib.shape, 0)
        grow = b * block_rows + row                     # global row index
        contrib = jnp.where(grow < rows_valid, contrib, 0.0)

    if block_rows != acc_rows:
        # Fold the (block_rows, 128) tile into an (acc_rows, 128) vreg slab
        # with pure elementwise VPU adds (no per-step XLU lane reduce).
        part = jnp.sum(
            contrib.reshape(block_rows // acc_rows, acc_rows, _LANES), axis=0)
    else:
        part = contrib

    o_ref[...] += part[None]


def smoothen_gradient_with_huber_loss(x, y, *, beta=0.1, delta=1.0):
    assert x.shape == y.shape
    n_valid = int(x.size)
    if n_valid == 0:
        return jnp.float32(float("nan"))   # matches torch mean over empty

    xf = jnp.ravel(x)
    yf = jnp.ravel(y)

    # Pad the lane dim to 128 only if needed. Padded zeros contribute exactly
    # 0 to both the Huber term and |x - y|, so they never need masking.
    pad = (-n_valid) % _LANES
    if pad:
        xf = jnp.pad(xf, (0, pad))
        yf = jnp.pad(yf, (0, pad))

    rows = (n_valid + pad) // _LANES
    x2d = xf.reshape(rows, _LANES)
    y2d = yf.reshape(rows, _LANES)

    block_rows = rows if rows <= _MAX_BLOCK_ROWS else _MAX_BLOCK_ROWS
    steps = pl.cdiv(rows, block_rows)                 # total row-blocks
    nparts = min(_MAX_PARTITIONS, steps)              # no duplicated work
    steps_per_part = pl.cdiv(steps, nparts)

    # Accumulator slab: a single (8,128) f32 vreg when the tile allows it,
    # otherwise the (small, full-extent) tile itself.
    acc_rows = 8 if block_rows % 8 == 0 else block_rows

    # Masking is needed iff the grid covers rows beyond the real data:
    # ragged last block, or a clamped duplicate block on the last partition.
    need_mask = (nparts * steps_per_part != steps) or (rows % block_rows != 0)

    def in_index_map(p, j):
        b = p * steps_per_part + j
        return (jnp.minimum(b, steps - 1), 0)         # clamp; extras masked

    kernel = functools.partial(
        _smooth_huber_kernel,
        beta=float(beta),
        delta=float(delta),
        rows_valid=rows,
        block_rows=block_rows,
        acc_rows=acc_rows,
        steps_per_part=steps_per_part,
        need_mask=need_mask,
    )

    in_bytes = n_valid * (x2d.dtype.itemsize + y2d.dtype.itemsize)
    out_bytes = nparts * acc_rows * _LANES * 4
    cost = pl.CostEstimate(
        flops=7 * n_valid,
        transcendentals=0,
        bytes_accessed=in_bytes + out_bytes,
    )

    partials = pl.pallas_call(
        kernel,
        out_shape=jax.ShapeDtypeStruct((nparts, acc_rows, _LANES), jnp.float32),
        grid_spec=pltpu.PrefetchScalarGridSpec(
            num_scalar_prefetch=0,
            grid=(nparts, steps_per_part),
            in_specs=[
                pl.BlockSpec((block_rows, _LANES), in_index_map),
                pl.BlockSpec((block_rows, _LANES), in_index_map),
            ],
            out_specs=pl.BlockSpec((1, acc_rows, _LANES), lambda p, j: (p, 0, 0)),
        ),
        compiler_params=pltpu.CompilerParams(
            dimension_semantics=("parallel", "arbitrary"),
        ),
        cost_estimate=cost,
    )(x2d, y2d)

    # Single final cross-lane/sublane reduce + mean, done once in JAX.
    return jnp.sum(partials, dtype=jnp.float32) / n_valid


def _reference(x, y, beta=0.1, delta=1.0):
    xf = jnp.ravel(x).astype(jnp.float32)
    yf = jnp.ravel(y).astype(jnp.float32)
    d = xf - yf
    ad = jnp.abs(d)
    huber = jnp.where(ad < delta, 0.5 * d * d, delta * (ad - 0.5 * delta))
    return jnp.mean(huber) + beta * jnp.mean(ad)


if __name__ == "__main__":
    key = jax.random.PRNGKey(0)
    kx, ky = jax.random.split(key)
    # NCHW example input, matching a typical image-regression use of the loss.
    x = jax.random.normal(kx, (2, 4, 16, 16), dtype=jnp.float32)
    y = jax.random.normal(ky, (2, 4, 16, 16), dtype=jnp.float32)

    out = smoothen_gradient_with_huber_loss(x, y, beta=0.1)
    out = jax.block_until_ready(out)

    ref = _reference(x, y, beta=0.1)
    assert jnp.allclose(out, ref, rtol=1e-5, atol=1e-6), (out, ref)
    print("KERNEL_OK")
</pallas_src>

<mosaic_0001>
module attributes {stable_mosaic.version = 11 : i64} {
  func.func @_smooth_huber_kernel(%arg0: i32, %arg1: i32, %arg2: memref<16x128xf32, #tpu.memory_space<vmem>>, %arg3: memref<16x128xf32, #tpu.memory_space<vmem>>, %arg4: memref<1x8x128xf32, #tpu.memory_space<vmem>>) attributes {dimension_semantics = [#tpu.dimension_semantics<parallel>, #tpu.dimension_semantics<arbitrary>], iteration_bounds = array<i64: 1, 1>, scalar_prefetch = 0 : i64, scratch_operands = 0 : i64, tpu.core_type = #tpu.core_type<tc>, window_params = [{transform_indices = @transform_0, window_bounds = array<i64: 16, 128>}, {transform_indices = @transform_1, window_bounds = array<i64: 16, 128>}, {transform_indices = @transform_2, window_bounds = array<i64: 1, 8, 128>}]} {
    %c0_i32 = arith.constant 0 : i32
    %0 = arith.cmpi eq, %arg1, %c0_i32 : i32
    %1 = arith.extui %0 : i1 to i32
    %c0_i32_0 = arith.constant 0 : i32
    %2 = arith.cmpi ne, %1, %c0_i32_0 : i32
    scf.if %2 {
      %cst_15 = arith.constant 0.000000e+00 : f32
      %26 = vector.broadcast %cst_15 : f32 to vector<1x8x128xf32>
      %c0_16 = arith.constant 0 : index
      %c0_17 = arith.constant 0 : index
      %c0_18 = arith.constant 0 : index
      %27 = vector.load %arg4[%c0_16, %c0_17, %c0_18] : memref<1x8x128xf32, #tpu.memory_space<vmem>>, vector<1x8x128xf32>
      tpu.vector_store %arg4[%c0_16, %c0_17, %c0_18], %26 {strides = array<i32>} : memref<1x8x128xf32, #tpu.memory_space<vmem>>, vector<1x8x128xf32>,
    } else {
    }
    %c0 = arith.constant 0 : index
    %c0_1 = arith.constant 0 : index
    %3 = vector.load %arg2[%c0, %c0_1] : memref<16x128xf32, #tpu.memory_space<vmem>>, vector<16x128xf32>
    %c0_2 = arith.constant 0 : index
    %c0_3 = arith.constant 0 : index
    %4 = vector.load %arg3[%c0_2, %c0_3] : memref<16x128xf32, #tpu.memory_space<vmem>>, vector<16x128xf32>
    %5 = arith.subf %3, %4 : vector<16x128xf32>
    %6 = math.absf %5 : vector<16x128xf32>
    %cst = arith.constant 1.000000e+00 : f32
    %7 = vector.broadcast %cst : f32 to vector<16x128xf32>
    %8 = arith.cmpf olt, %6, %7 : vector<16x128xf32>
    %cst_4 = arith.constant 5.000000e-01 : f32
    %9 = vector.broadcast %cst_4 : f32 to vector<16x128xf32>
    %10 = arith.mulf %9, %5 : vector<16x128xf32>
    %11 = arith.mulf %10, %5 : vector<16x128xf32>
    %cst_5 = arith.constant 5.000000e-01 : f32
    %12 = vector.broadcast %cst_5 : f32 to vector<16x128xf32>
    %13 = arith.subf %6, %12 : vector<16x128xf32>
    %cst_6 = arith.constant 1.000000e+00 : f32
    %14 = vector.broadcast %cst_6 : f32 to vector<16x128xf32>
    %15 = arith.mulf %14, %13 : vector<16x128xf32>
    %16 = arith.select %8, %11, %15 : vector<16x128xi1>, vector<16x128xf32>
    %cst_7 = arith.constant 1.000000e-01 : f32
    %17 = vector.broadcast %cst_7 : f32 to vector<16x128xf32>
    %18 = arith.mulf %17, %6 : vector<16x128xf32>
    %19 = arith.addf %16, %18 : vector<16x128xf32>
    %20 = vector.shape_cast %19 : vector<16x128xf32> to vector<2x8x128xf32>
    %cst_8 = arith.constant dense<0.000000e+00> : vector<8x128xf32>
    %21 = vector.multi_reduction <add>, %20, %cst_8 [0] : vector<2x8x128xf32> to vector<8x128xf32>
    %c0_9 = arith.constant 0 : index
    %c0_10 = arith.constant 0 : index
    %c0_11 = arith.constant 0 : index
    %22 = vector.load %arg4[%c0_9, %c0_10, %c0_11] : memref<1x8x128xf32, #tpu.memory_space<vmem>>, vector<1x8x128xf32>
    %23 = vector.shape_cast %21 : vector<8x128xf32> to vector<1x8x128xf32>
    %24 = arith.addf %22, %23 : vector<1x8x128xf32>
    %c0_12 = arith.constant 0 : index
    %c0_13 = arith.constant 0 : index
    %c0_14 = arith.constant 0 : index
    %25 = vector.load %arg4[%c0_12, %c0_13, %c0_14] : memref<1x8x128xf32, #tpu.memory_space<vmem>>, vector<1x8x128xf32>
    tpu.vector_store %arg4[%c0_12, %c0_13, %c0_14], %24 {strides = array<i32>} : memref<1x8x128xf32, #tpu.memory_space<vmem>>, vector<1x8x128xf32>,
    return
  }
  func.func @transform_0(%arg0: i32, %arg1: i32) -> (i32, i32) {
    %c1_i32 = arith.constant 1 : i32
    %0 = arith.muli %arg0, %c1_i32 : i32
    %1 = arith.addi %0, %arg1 : i32
    %c0_i32 = arith.constant 0 : i32
    %2 = arith.minsi %1, %c0_i32 : i32
    %c0_i32_0 = arith.constant 0 : i32
    %c0_i32_1 = arith.constant 0 : i32
    return %2, %c0_i32_0 : i32, i32
  }
  func.func @transform_1(%arg0: i32, %arg1: i32) -> (i32, i32) {
    %c1_i32 = arith.constant 1 : i32
    %0 = arith.muli %arg0, %c1_i32 : i32
    %1 = arith.addi %0, %arg1 : i32
    %c0_i32 = arith.constant 0 : i32
    %2 = arith.minsi %1, %c0_i32 : i32
    %c0_i32_0 = arith.constant 0 : i32
    %c0_i32_1 = arith.constant 0 : i32
    return %2, %c0_i32_0 : i32, i32
  }
  func.func @transform_2(%arg0: i32, %arg1: i32) -> (i32, i32, i32) {
    %c0_i32 = arith.constant 0 : i32
    %c0_i32_0 = arith.constant 0 : i32
    %c0_i32_1 = arith.constant 0 : i32
    return %arg0, %c0_i32, %c0_i32_0 : i32, i32, i32
  }
}

</mosaic_0001>

<llo_original>
// kernel: tpu_custom_call.1
$region0: #{tpu_custom_call.1}
  #allocation0 [shape = 'u32[]', space=smem, size = 0x4, offset = 0x4, fixed_abs, tag = 'smem constant byte address 0x4 - core index']
  #allocation1 [shape = 'u32[144,128]{1,0:T(1,128)}', space=vmem, size = 0x12000, scoped, tag = 'internal scratch']
  %s0 = inlined_call_operand.hbm [shape: f32[16,128], index: 0, kind: input, shape index: {}]
  %s1 = inlined_call_operand.hbm [shape: f32[16,128], index: 1, kind: input, shape index: {}]
  %s2 = inlined_call_operand.hbm [shape: f32[1,8,128], index: 2, kind: output, shape index: {}]
  %s3 = sld [smem:[#allocation0]]
  $region30: #{tpu_custom_call.1} parent=0
    _
  %s5 = ssub.s32 1, %s3
  %s6 = scalar_select 0, %s5, %s3
  $region1: #{tpu_custom_call.1} parent=0
    #allocation2 [shape = 'u8[8192]{0}', space=vmem, size = 0x2000, scoped, tag = 'input window, operand 0, single buffered']
    #allocation3 [shape = 's32[1]{0}', space=sflag, size = 0x4, scoped, tag = 'scoped memory for tpu_custom_call.1']
    #allocation4 [shape = 's32[1]{0}', space=sflag, size = 0x4, scoped, tag = 'scoped memory for tpu_custom_call.1']
    #allocation5 [shape = 'u8[8192]{0}', space=vmem, size = 0x2000, scoped, tag = 'input window, operand 1, single buffered']
    #allocation6 [shape = 's32[1]{0}', space=sflag, size = 0x4, scoped, tag = 'scoped memory for tpu_custom_call.1']
    #allocation7 [shape = 'u8[4096]{0}', space=vmem, size = 0x1000, scoped, tag = 'output window, operand 0, single buffered']
    %7 = vsyncpa [#allocation3], 0
    %8 = vsyncpa [#allocation6], 0
    %9 = vsyncpa [#allocation4], 0
    // Predicated region
    $region2: #{tpu_custom_call.1} parent=1 // pred_check
      _
    $region3: #{tpu_custom_call.1} parent=1 // pred_check_branch
      %11 = sbr.rel (0) target = $region5
    $region4: #{tpu_custom_call.1} parent=1 // pred_region
      %s12 = sadd.s32 0, 0
      %p13 = scmp.lt.s32.totalorder %s12, 0
      %s14 = scalar_select %p13, %s12, 0
      %s15 = smul.u32 2, %s14
      %s17 = ssub.s32 256, 256
      %18 = vsyncadd [#allocation3], %s17
      %s19 = smul.addr %s15, 128
      %s20 = scalar_lea.hbm %s0, %s19
      %s21 = sshll.u32 [#allocation2], 4
      %s22 = int_to_ptr.vmem [resolvable:$true] %s21
      %27 = dma.hbm_to_vmem [thread:$0]  %s20, 256, %s22, [#allocation3], 128, 128, 8
    $region5: #{tpu_custom_call.1} parent=1 // pred_fallthru
      _
    // Predicated region
    $region6: #{tpu_custom_call.1} parent=1 // pred_check
      _
    $region7: #{tpu_custom_call.1} parent=1 // pred_check_branch
      %29 = sbr.rel (0) target = $region9
    $region8: #{tpu_custom_call.1} parent=1 // pred_region
      %s30 = sadd.s32 0, 0
      %p31 = scmp.lt.s32.totalorder %s30, 0
      %s32 = scalar_select %p31, %s30, 0
      %s33 = smul.u32 2, %s32
      %s35 = ssub.s32 256, 256
      %36 = vsyncadd [#allocation6], %s35
      %s37 = smul.addr %s33, 128
      %s38 = scalar_lea.hbm %s1, %s37
      %s39 = sshll.u32 [#allocation5], 4
      %s40 = int_to_ptr.vmem [resolvable:$true] %s39
      %45 = dma.hbm_to_vmem [thread:$0]  %s38, 256, %s40, [#allocation6], 128, 128, 8
    $region9: #{tpu_custom_call.1} parent=1 // pred_fallthru
      _
    // Predicated region
    $region10: #{tpu_custom_call.1} parent=1 // pred_check
      _
    $region11: #{tpu_custom_call.1} parent=1 // pred_check_branch
      %47 = sbr.rel (0) target = $region13
    $region12: #{tpu_custom_call.1} parent=1 // pred_region
      %48 = dma.done [#allocation3], 256
    $region13: #{tpu_custom_call.1} parent=1 // pred_fallthru
      _
    // Predicated region
    $region14: #{tpu_custom_call.1} parent=1 // pred_check
      _
    $region15: #{tpu_custom_call.1} parent=1 // pred_check_branch
      %50 = sbr.rel (0) target = $region17
    $region16: #{tpu_custom_call.1} parent=1 // pred_region
      %51 = dma.done [#allocation6], 256
    $region17: #{tpu_custom_call.1} parent=1 // pred_fallthru
      _
    %s52 = sadd.s32 0, 0
    %p53 = scmp.lt.s32.totalorder %s52, 0
    %s54 = scalar_select %p53, %s52, 0
    %s55 = smul.u32 2, %s54
    %s56 = sadd.s32 0, 0
    %p57 = scmp.lt.s32.totalorder %s56, 0
    %s58 = scalar_select %p57, %s56, 0
    %s59 = smul.u32 2, %s58
    %p60 = scmp.eq.s32.totalorder 0, 0
    // Predicated region
    $region18: #{tpu_custom_call.1} parent=1 // pred_check
      %p61 = pneg %p60
    $region19: #{tpu_custom_call.1} parent=1 // pred_check_branch
      %63 = sbr.rel (%p61) target = $region21
    $region20: #{tpu_custom_call.1} parent=1 // pred_region
      %64 = vst [vmem:[#allocation7] sm:$0xff] 0.0
    $region21: #{tpu_custom_call.1} parent=1 // pred_fallthru
      _
    %v65 = vld [vmem:[#allocation2] sm:$0xff]
    %v66 = vld [vmem:[#allocation2 + $0x8] sm:$0xff]
    %v67 = vld [vmem:[#allocation5] sm:$0xff]
    %v68 = vld [vmem:[#allocation5 + $0x8] sm:$0xff]
    %v69 = vsub.f32 %v65, %v67
    %v70 = vsub.f32 %v66, %v68
    %v71 = vand.u32 2147483647, %v69
    %v72 = vand.u32 2147483647, %v70
    %vm73 = vcmp.lt.f32.partialorder %v71, 1.0
    %vm74 = vcmp.lt.f32.partialorder %v72, 1.0
    %v75 = vmul.f32 %v69, 0.5
    %v76 = vmul.f32 %v70, 0.5
    %v77 = vmul.f32 %v75, %v69
    %v78 = vmul.f32 %v76, %v70
    %v79 = vsub.f32 %v71, 0.5
    %v80 = vsub.f32 %v72, 0.5
    %v81 = vsel %vm73, %v77, %v79
    %v82 = vsel %vm74, %v78, %v80
    %v83 = vmul.f32 %v71, 0.1
    %v84 = vmul.f32 %v72, 0.1
    %v85 = vadd.f32 %v81, %v83
    %v86 = vadd.f32 %v82, %v84
    %v87 = vadd.f32 %v85, %v86
    %v88 = vld [vmem:[#allocation7] sm:$0xff]
    %v89 = vadd.f32 %v88, %v87
    %90 = vst [vmem:[#allocation7] sm:$0xff] %v89
    // Predicated region
    $region22: #{tpu_custom_call.1} parent=1 // pred_check
      _
    $region23: #{tpu_custom_call.1} parent=1 // pred_check_branch
      %92 = sbr.rel (0) target = $region25
    $region24: #{tpu_custom_call.1} parent=1 // pred_region
      %s94 = ssub.s32 128, 128
      %95 = vsyncadd [#allocation4], %s94
      %s97 = sshll.u32 [#allocation7], 4
      %s98 = int_to_ptr.vmem [resolvable:$true] %s97
      %100 = dma.vmem_to_hbm [thread:$0]  %s98, 128, %s2, [#allocation4]
    $region25: #{tpu_custom_call.1} parent=1 // pred_fallthru
      _
    // Predicated region
    $region26: #{tpu_custom_call.1} parent=1 // pred_check
      _
    $region27: #{tpu_custom_call.1} parent=1 // pred_check_branch
      %102 = sbr.rel (0) target = $region29
    $region28: #{tpu_custom_call.1} parent=1 // pred_region
      %103 = dma.done [#allocation4], 128
    $region29: #{tpu_custom_call.1} parent=1 // pred_fallthru
      _
    %104 = vsyncpa [#allocation3], 1
    %105 = vsyncpa [#allocation6], 1
    %106 = vsyncpa [#allocation4], 1

</llo_original>
